<compile_context>
chip_gen: v7x
topology: tpu7x:2x2x1
jax: 0.10.0
libtpu: 0.0.40
codegen_flags: <defaults>
</compile_context>

<pallas_src>
import functools

import jax
import jax.numpy as jnp
from jax.experimental import pallas as pl
from jax.experimental.pallas import tpu as pltpu


# ----------------------------- helpers ---------------------------------------

def _dtype_limits(dtype):
    """(lowest, highest) representable values for dtype as Python scalars."""
    if jnp.issubdtype(dtype, jnp.floating):
        return float(-jnp.inf), float(jnp.inf)
    info = jnp.iinfo(dtype)
    return int(info.min), int(info.max)


def _sublane_multiple(dtype):
    itemsize = jnp.dtype(dtype).itemsize
    return {4: 8, 2: 16, 1: 32}.get(itemsize, 8)


def _choose_block_shape(d0, flat_d, dtype, target_bytes=4 * 1024 * 1024):
    """Pick (block_rows, block_cols): ~target_bytes per tile, (8,128)-legal."""
    itemsize = jnp.dtype(dtype).itemsize
    sub = _sublane_multiple(dtype)
    min_rows = min(d0, sub)
    if flat_d <= 128 or flat_d * itemsize * min_rows <= target_bytes:
        # Full-width (lane-dense) blocks; tile only the row axis.
        block_cols = flat_d
        rows = max(1, target_bytes // max(1, flat_d * itemsize))
        if rows >= d0:
            block_rows = d0
        else:
            block_rows = min(d0, max(sub, (rows // sub) * sub))
    else:
        # Very wide rows: tile the flattened (D1*D2) axis in 128-multiples.
        block_rows = min_rows
        cols = max(128, target_bytes // max(1, block_rows * itemsize))
        cols = (cols // 128) * 128
        block_cols = min(cols, flat_d)
    return block_rows, block_cols


# ----------------------------- kernel -----------------------------------------

def _rowwise_minmax_kernel(x_ref, min_ref, max_ref, *,
                           flat_d, block_cols, lo, hi, mask_cols):
    """Per-row (dim 0) min/max partials, accumulated across column blocks.

    Grid: (row_blocks [parallel], col_blocks [arbitrary]).
    Output tile (block_rows, 1) is resident across the column axis.
    Steady state is just reduce + min/max; the ragged-column mask (iota +
    compare + where) runs only on the last column block via pl.when.
    """
    j = pl.program_id(1)
    x = x_ref[...]                                           # (block_rows, block_cols)

    def partials(x_for_min, x_for_max):
        return (jnp.min(x_for_min, axis=1, keepdims=True),   # (block_rows, 1)
                jnp.max(x_for_max, axis=1, keepdims=True))

    if not mask_cols:
        pmin, pmax = partials(x, x)

        @pl.when(j == 0)
        def _init():
            min_ref[...] = pmin
            max_ref[...] = pmax

        @pl.when(j != 0)
        def _acc():
            min_ref[...] = jnp.minimum(min_ref[...], pmin)
            max_ref[...] = jnp.maximum(max_ref[...], pmax)
    else:
        # mask_cols implies num_programs(1) >= 2, so j == 0 and j == last are
        # disjoint and the three branches below are exhaustive & exclusive.
        last = pl.num_programs(1) - 1

        @pl.when(j == 0)
        def _init():
            pmin, pmax = partials(x, x)
            min_ref[...] = pmin
            max_ref[...] = pmax

        @pl.when(jnp.logical_and(j != 0, j != last))
        def _steady():
            pmin, pmax = partials(x, x)
            min_ref[...] = jnp.minimum(min_ref[...], pmin)
            max_ref[...] = jnp.maximum(max_ref[...], pmax)

        @pl.when(j == last)
        def _tail():
            col = jax.lax.broadcasted_iota(jnp.int32, x.shape, 1) + j * block_cols
            valid = col < flat_d
            pmin, pmax = partials(
                jnp.where(valid, x, jnp.array(hi, x.dtype)),
                jnp.where(valid, x, jnp.array(lo, x.dtype)))
            min_ref[...] = jnp.minimum(min_ref[...], pmin)
            max_ref[...] = jnp.maximum(max_ref[...], pmax)


# ----------------------------- wrapper ----------------------------------------

def _rowwise_minmax(x2, block_rows, block_cols):
    """Per-row min/max of a 2-D array via a single streaming pallas_call."""
    d0, flat_d = x2.shape
    dtype = x2.dtype
    itemsize = jnp.dtype(dtype).itemsize
    sub = _sublane_multiple(dtype)
    lo, hi = _dtype_limits(dtype)

    auto_rows, auto_cols = _choose_block_shape(d0, flat_d, dtype)

    if block_cols is None:
        block_cols = auto_cols
    else:
        block_cols = int(block_cols)
        if block_cols >= flat_d or flat_d <= 128:
            block_cols = flat_d
        else:
            block_cols = max(128, (block_cols // 128) * 128)
            if block_cols >= flat_d:
                block_cols = flat_d

    if block_rows is None:
        block_rows = auto_rows
    else:
        block_rows = min(int(block_rows), d0)
        if block_rows < d0:
            block_rows = min(d0, max(sub, (block_rows // sub) * sub))

    grid = (pl.cdiv(d0, block_rows), pl.cdiv(flat_d, block_cols))
    mask_cols = (block_cols < flat_d) and (flat_d % block_cols != 0)

    block_bytes = block_rows * block_cols * itemsize
    vmem_limit = int(max(16 * 2**20, min(2 * block_bytes + 8 * 2**20, 56 * 2**20)))

    cost = pl.CostEstimate(
        flops=2 * d0 * flat_d,
        transcendentals=0,
        bytes_accessed=d0 * flat_d * itemsize + 2 * d0 * itemsize,
    )

    kernel = functools.partial(
        _rowwise_minmax_kernel, flat_d=flat_d, block_cols=block_cols,
        lo=lo, hi=hi, mask_cols=mask_cols)

    min_v, max_v = pl.pallas_call(
        kernel,
        out_shape=(
            jax.ShapeDtypeStruct((d0, 1), dtype),
            jax.ShapeDtypeStruct((d0, 1), dtype),
        ),
        grid=grid,
        in_specs=[pl.BlockSpec((block_rows, block_cols), lambda i, j: (i, j))],
        out_specs=(
            pl.BlockSpec((block_rows, 1), lambda i, j: (i, 0)),
            pl.BlockSpec((block_rows, 1), lambda i, j: (i, 0)),
        ),
        compiler_params=pltpu.CompilerParams(
            dimension_semantics=("parallel", "arbitrary"),
            vmem_limit_bytes=vmem_limit),
        cost_estimate=cost,
    )(x2)
    return min_v, max_v


def range_tracker_forward(x, q_level, block_rows=None, block_cols=None):
    """Pallas implementation of RangeTracker.forward semantics."""
    assert x.ndim == 3, "RangeTracker (1D util) expects a 3-D tensor"
    d0, d1, d2 = x.shape
    x2 = x.reshape(d0, d1 * d2)          # lane-dense 2-D view

    min_rows, max_rows = _rowwise_minmax(x2, block_rows, block_cols)

    if q_level == 'L':
        # torch.min(input)/torch.max(input) return 0-d tensors; final reduce
        # over the tiny (D0, 1) partials is done in the wrapper (keeps the
        # kernel grid fully parallel -- both TCs busy on v7x).
        return jnp.min(min_rows).reshape(()), jnp.max(max_rows).reshape(())
    elif q_level == 'C':
        # min over dim 2 then dim 1, keepdim=True twice -> (D0, 1, 1)
        return min_rows.reshape(d0, 1, 1), max_rows.reshape(d0, 1, 1)
    else:
        raise ValueError(f"unknown q_level: {q_level!r}")


# ----------------------------- demo -------------------------------------------

if __name__ == "__main__":
    key = jax.random.PRNGKey(0)

    # Small 3-D input consistent with the 1D quant util: (D0, D1, D2).
    x = jax.random.normal(key, (20, 8, 16), dtype=jnp.float32)

    ref_min_l = jnp.min(x)
    ref_max_l = jnp.max(x)
    ref_min_c = jnp.min(x, axis=(1, 2), keepdims=True)
    ref_max_c = jnp.max(x, axis=(1, 2), keepdims=True)

    # Default block sizing (single block for this tiny input).
    min_l, max_l = range_tracker_forward(x, 'L')
    min_c, max_c = range_tracker_forward(x, 'C')
    jax.block_until_ready((min_l, max_l, min_c, max_c))

    assert min_l.shape == () and max_l.shape == ()
    assert min_c.shape == (20, 1, 1) and max_c.shape == (20, 1, 1)
    assert jnp.allclose(min_l, ref_min_l) and jnp.allclose(max_l, ref_max_l)
    assert jnp.allclose(min_c, ref_min_c) and jnp.allclose(max_c, ref_max_c)

    # Force multi-row-block streaming (grid rows=3 with a partial tail block)
    # to exercise the clipped-writeback row-tail path.
    min_l2, max_l2 = range_tracker_forward(x, 'L', block_rows=8)
    min_c2, max_c2 = range_tracker_forward(x, 'C', block_rows=8)
    jax.block_until_ready((min_l2, max_l2, min_c2, max_c2))

    assert jnp.allclose(min_l2, ref_min_l) and jnp.allclose(max_l2, ref_max_l)
    assert jnp.allclose(min_c2, ref_min_c) and jnp.allclose(max_c2, ref_max_c)

    # Force column tiling with a ragged last column block (flat_d = 192,
    # block_cols = 128) plus a ragged row tail, exercising the pl.when-gated
    # mask path and the resident-output column accumulation.
    y = jax.random.normal(jax.random.fold_in(key, 1), (12, 8, 24), dtype=jnp.float32)
    ref_min_ly = jnp.min(y)
    ref_max_ly = jnp.max(y)
    ref_min_cy = jnp.min(y, axis=(1, 2), keepdims=True)
    ref_max_cy = jnp.max(y, axis=(1, 2), keepdims=True)

    min_l3, max_l3 = range_tracker_forward(y, 'L', block_rows=8, block_cols=128)
    min_c3, max_c3 = range_tracker_forward(y, 'C', block_rows=8, block_cols=128)
    jax.block_until_ready((min_l3, max_l3, min_c3, max_c3))

    assert jnp.allclose(min_l3, ref_min_ly) and jnp.allclose(max_l3, ref_max_ly)
    assert jnp.allclose(min_c3, ref_min_cy) and jnp.allclose(max_c3, ref_max_cy)

    print("KERNEL_OK")
</pallas_src>

<mosaic_0001>
module attributes {stable_mosaic.version = 11 : i64} {
  func.func @_rowwise_minmax_kernel(%arg0: i32, %arg1: i32, %arg2: memref<20x128xf32, #tpu.memory_space<vmem>>, %arg3: memref<20x1xf32, #tpu.memory_space<vmem>>, %arg4: memref<20x1xf32, #tpu.memory_space<vmem>>) attributes {dimension_semantics = [#tpu.dimension_semantics<parallel>, #tpu.dimension_semantics<arbitrary>], iteration_bounds = array<i64: 1, 1>, scalar_prefetch = 0 : i64, scratch_operands = 0 : i64, tpu.core_type = #tpu.core_type<tc>, window_params = [{transform_indices = @transform_0, window_bounds = array<i64: 20, 128>}, {transform_indices = @transform_1, window_bounds = array<i64: 20, 1>}, {transform_indices = @transform_2, window_bounds = array<i64: 20, 1>}]} {
    %c0 = arith.constant 0 : index
    %c0_0 = arith.constant 0 : index
    %0 = vector.load %arg2[%c0, %c0_0] : memref<20x128xf32, #tpu.memory_space<vmem>>, vector<20x128xf32>
    %cst = arith.constant dense<0x7F800000> : vector<20xf32>
    %1 = vector.multi_reduction <minimumf>, %0, %cst [1] : vector<20x128xf32> to vector<20xf32>
    %2 = vector.shape_cast %1 : vector<20xf32> to vector<20x1xf32>
    %cst_1 = arith.constant dense<0xFF800000> : vector<20xf32>
    %3 = vector.multi_reduction <maximumf>, %0, %cst_1 [1] : vector<20x128xf32> to vector<20xf32>
    %4 = vector.shape_cast %3 : vector<20xf32> to vector<20x1xf32>
    %c0_i32 = arith.constant 0 : i32
    %5 = arith.cmpi eq, %arg1, %c0_i32 : i32
    %6 = arith.extui %5 : i1 to i32
    %c0_i32_2 = arith.constant 0 : i32
    %7 = arith.cmpi ne, %6, %c0_i32_2 : i32
    scf.if %7 {
      %c0_5 = arith.constant 0 : index
      %c0_6 = arith.constant 0 : index
      %11 = vector.load %arg3[%c0_5, %c0_6] : memref<20x1xf32, #tpu.memory_space<vmem>>, vector<20x1xf32>
      tpu.vector_store %arg3[%c0_5, %c0_6], %2 {strides = array<i32>} : memref<20x1xf32, #tpu.memory_space<vmem>>, vector<20x1xf32>,
      %c0_7 = arith.constant 0 : index
      %c0_8 = arith.constant 0 : index
      %12 = vector.load %arg4[%c0_7, %c0_8] : memref<20x1xf32, #tpu.memory_space<vmem>>, vector<20x1xf32>
      tpu.vector_store %arg4[%c0_7, %c0_8], %4 {strides = array<i32>} : memref<20x1xf32, #tpu.memory_space<vmem>>, vector<20x1xf32>,
    } else {
    }
    %c0_i32_3 = arith.constant 0 : i32
    %8 = arith.cmpi ne, %arg1, %c0_i32_3 : i32
    %9 = arith.extui %8 : i1 to i32
    %c0_i32_4 = arith.constant 0 : i32
    %10 = arith.cmpi ne, %9, %c0_i32_4 : i32
    scf.if %10 {
      %c0_5 = arith.constant 0 : index
      %c0_6 = arith.constant 0 : index
      %11 = vector.load %arg3[%c0_5, %c0_6] : memref<20x1xf32, #tpu.memory_space<vmem>>, vector<20x1xf32>
      %12 = arith.minimumf %11, %2 : vector<20x1xf32>
      %c0_7 = arith.constant 0 : index
      %c0_8 = arith.constant 0 : index
      %13 = vector.load %arg3[%c0_7, %c0_8] : memref<20x1xf32, #tpu.memory_space<vmem>>, vector<20x1xf32>
      tpu.vector_store %arg3[%c0_7, %c0_8], %12 {strides = array<i32>} : memref<20x1xf32, #tpu.memory_space<vmem>>, vector<20x1xf32>,
      %c0_9 = arith.constant 0 : index
      %c0_10 = arith.constant 0 : index
      %14 = vector.load %arg4[%c0_9, %c0_10] : memref<20x1xf32, #tpu.memory_space<vmem>>, vector<20x1xf32>
      %15 = arith.maximumf %14, %4 : vector<20x1xf32>
      %c0_11 = arith.constant 0 : index
      %c0_12 = arith.constant 0 : index
      %16 = vector.load %arg4[%c0_11, %c0_12] : memref<20x1xf32, #tpu.memory_space<vmem>>, vector<20x1xf32>
      tpu.vector_store %arg4[%c0_11, %c0_12], %15 {strides = array<i32>} : memref<20x1xf32, #tpu.memory_space<vmem>>, vector<20x1xf32>,
    } else {
    }
    return
  }
  func.func @transform_0(%arg0: i32, %arg1: i32) -> (i32, i32) {
    %c0_i32 = arith.constant 0 : i32
    return %arg0, %arg1 : i32, i32
  }
  func.func @transform_1(%arg0: i32, %arg1: i32) -> (i32, i32) {
    %c0_i32 = arith.constant 0 : i32
    %c0_i32_0 = arith.constant 0 : i32
    return %arg0, %c0_i32 : i32, i32
  }
  func.func @transform_2(%arg0: i32, %arg1: i32) -> (i32, i32) {
    %c0_i32 = arith.constant 0 : i32
    %c0_i32_0 = arith.constant 0 : i32
    return %arg0, %c0_i32 : i32, i32
  }
}

</mosaic_0001>

<llo_original>
// kernel: tpu_custom_call.1
$region0: #{tpu_custom_call.1}
  #allocation0 [shape = 'u32[]', space=smem, size = 0x4, offset = 0x4, fixed_abs, tag = 'smem constant byte address 0x4 - core index']
  #allocation1 [shape = 'u32[144,128]{1,0:T(1,128)}', space=vmem, size = 0x12000, scoped, tag = 'internal scratch']
  %s0 = inlined_call_operand.hbm [shape: f32[20,128], index: 0, kind: input, shape index: {}]
  %s1 = inlined_call_operand.vmem [shape: f32[20,1], index: 1, kind: output, shape index: {0}]
  %s2 = inlined_call_operand.vmem [shape: f32[20,1], index: 2, kind: output, shape index: {1}]
  %3 = xla_tuple %s1, %s2
  %s4 = sld [smem:[#allocation0]]
  $region34: #{tpu_custom_call.1} parent=0
    _
  %s6 = ssub.s32 1, %s4
  %s7 = scalar_select 0, %s6, %s4
  $region1: #{tpu_custom_call.1} parent=0
    #allocation2 [shape = 'u8[12288]{0}', space=vmem, size = 0x3000, scoped, tag = 'input window, operand 0, single buffered']
    #allocation3 [shape = 's32[1]{0}', space=sflag, size = 0x4, scoped, tag = 'scoped memory for tpu_custom_call.1']
    %8 = vsyncpa [#allocation3], 0
    // Predicated region
    $region2: #{tpu_custom_call.1} parent=1 // pred_check
      _
    $region3: #{tpu_custom_call.1} parent=1 // pred_check_branch
      %10 = sbr.rel (0) target = $region5
    $region4: #{tpu_custom_call.1} parent=1 // pred_region
      %s12 = ssub.s32 384, 384
      %13 = vsyncadd [#allocation3], %s12
      %s14 = sshll.u32 [#allocation2], 4
      %s15 = int_to_ptr.vmem [resolvable:$true] %s14
      %20 = dma.hbm_to_vmem [thread:$0]  %s0, 384, %s15, [#allocation3], 128, 128, 8
    $region5: #{tpu_custom_call.1} parent=1 // pred_fallthru
      _
    // Predicated region
    $region6: #{tpu_custom_call.1} parent=1 // pred_check
      _
    $region7: #{tpu_custom_call.1} parent=1 // pred_check_branch
      %22 = sbr.rel (0) target = $region9
    $region8: #{tpu_custom_call.1} parent=1 // pred_region
      %23 = dma.done [#allocation3], 384
    $region9: #{tpu_custom_call.1} parent=1 // pred_fallthru
      _
    %v24 = vld [vmem:[#allocation2] sm:$0xff]
    %v25 = vld [vmem:[#allocation2 + $0x8] sm:$0xff]
    %v26 = vld [vmem:[#allocation2 + $0x10] sm:$0xf]
    %27 = vmin.xlane.f32.xlu0 %v24
    %v28 = vpop.xlane.xlu0 %27
    %29 = vmin.xlane.f32.xlu0 %v25
    %v30 = vpop.xlane.xlu0 %29
    %vm31 = vcmask 1043456
    %v32 = vsel %vm31, %v26, inf
    %33 = vmin.xlane.f32.xlu0 %v32
    %v34 = vpop.xlane.xlu0 %33
    %35 = vmax.xlane.f32.xlu0 %v24
    %v36 = vpop.xlane.xlu0 %35
    %37 = vmax.xlane.f32.xlu0 %v25
    %v38 = vpop.xlane.xlu0 %37
    %v39 = vsel %vm31, %v26, -inf
    %40 = vmax.xlane.f32.xlu0 %v39
    %v41 = vpop.xlane.xlu0 %40
    %p42 = scmp.eq.s32.totalorder 0, 0
    // Predicated region
    $region10: #{tpu_custom_call.1} parent=1 // pred_check
      %p43 = pneg %p42
    $region11: #{tpu_custom_call.1} parent=1 // pred_check_branch
      %45 = sbr.rel (%p43) target = $region13
    $region12: #{tpu_custom_call.1} parent=1 // pred_region
      %vm46 = vcmask 7168
      %47 = vst.msk [vmem:[%s1] sm:$0xff] %vm46, %v28
      %48 = vst.msk [vmem:[%s1 + $0x8] sm:$0xff] %vm46, %v30
      %vm49 = vcmask 3072
      %50 = vst.msk [vmem:[%s1 + $0x10] sm:$0xf] %vm49, %v34
      %51 = vst.msk [vmem:[%s2] sm:$0xff] %vm46, %v36
      %52 = vst.msk [vmem:[%s2 + $0x8] sm:$0xff] %vm46, %v38
      %53 = vst.msk [vmem:[%s2 + $0x10] sm:$0xf] %vm49, %v41
    $region13: #{tpu_custom_call.1} parent=1 // pred_fallthru
      _
    %p54 = scmp.ne.s32.totalorder 0, 0
    // Predicated region
    $region14: #{tpu_custom_call.1} parent=1 // pred_check
      %p55 = pneg %p54
    $region15: #{tpu_custom_call.1} parent=1 // pred_check_branch
      %57 = sbr.rel (%p55) target = $region17
    $region16: #{tpu_custom_call.1} parent=1 // pred_region
      %v58 = vld [vmem:[%s1] sm:$0xff]
      %v59 = vld [vmem:[%s1 + $0x8] sm:$0xff]
      %v60 = vld [vmem:[%s1 + $0x10] sm:$0xf]
      %v61 = vmin.f32 %v58, %v28
      %v62 = vmin.f32 %v59, %v30
      %v63 = vmin.f32 %v60, %v34
      %vm64 = vcmask 7168
      %65 = vst.msk [vmem:[%s1] sm:$0xff] %vm64, %v61
      %66 = vst.msk [vmem:[%s1 + $0x8] sm:$0xff] %vm64, %v62
      %vm67 = vcmask 3072
      %68 = vst.msk [vmem:[%s1 + $0x10] sm:$0xf] %vm67, %v63
      %v69 = vld [vmem:[%s2] sm:$0xff]
      %v70 = vld [vmem:[%s2 + $0x8] sm:$0xff]
      %v71 = vld [vmem:[%s2 + $0x10] sm:$0xf]
      %v72 = vmax.f32 %v69, %v36
      %v73 = vmax.f32 %v70, %v38
      %v74 = vmax.f32 %v71, %v41
      %75 = vst.msk [vmem:[%s2] sm:$0xff] %vm64, %v72
      %76 = vst.msk [vmem:[%s2 + $0x8] sm:$0xff] %vm64, %v73
      %77 = vst.msk [vmem:[%s2 + $0x10] sm:$0xf] %vm67, %v74
    $region17: #{tpu_custom_call.1} parent=1 // pred_fallthru
      _
    // Predicated region
    $region18: #{tpu_custom_call.1} parent=1 // pred_check
      _
    $region19: #{tpu_custom_call.1} parent=1 // pred_check_branch
      %79 = sbr.rel (0) target = $region21
    $region20: #{tpu_custom_call.1} parent=1 // pred_region
      _
    $region21: #{tpu_custom_call.1} parent=1 // pred_fallthru
      _
    // Predicated region
    $region22: #{tpu_custom_call.1} parent=1 // pred_check
      _
    $region23: #{tpu_custom_call.1} parent=1 // pred_check_branch
      %81 = sbr.rel (0) target = $region25
    $region24: #{tpu_custom_call.1} parent=1 // pred_region
      _
    $region25: #{tpu_custom_call.1} parent=1 // pred_fallthru
      _
    // Predicated region
    $region26: #{tpu_custom_call.1} parent=1 // pred_check
      _
    $region27: #{tpu_custom_call.1} parent=1 // pred_check_branch
      %83 = sbr.rel (0) target = $region29
    $region28: #{tpu_custom_call.1} parent=1 // pred_region
      _
    $region29: #{tpu_custom_call.1} parent=1 // pred_fallthru
      _
    // Predicated region
    $region30: #{tpu_custom_call.1} parent=1 // pred_check
      _
    $region31: #{tpu_custom_call.1} parent=1 // pred_check_branch
      %85 = sbr.rel (0) target = $region33
    $region32: #{tpu_custom_call.1} parent=1 // pred_region
      _
    $region33: #{tpu_custom_call.1} parent=1 // pred_fallthru
      _
    %86 = vsyncpa [#allocation3], 1

</llo_original>
